<compile_context>
chip_gen: v6e
topology: v6e:2x2x1
jax: 0.10.0
libtpu: 0.0.40
codegen_flags: <defaults>
</compile_context>

<pallas_src>
import functools

import jax
import jax.numpy as jnp
from jax import lax
from jax.experimental import pallas as pl
from jax.experimental.pallas import tpu as pltpu


def _round_up(x, m):
    return ((x + m - 1) // m) * m


def _mi_kernel(z_ref, w1_ref, b1_ref, w2_ref, b2_ref, w3_ref, b3_ref, o_ref):
    # z_ref: (TILE_B, in_dim); weights are branch-fused (see wrapper).
    z = z_ref[...]
    h = jnp.dot(z, w1_ref[...], preferred_element_type=jnp.float32) + b1_ref[...]
    h = jnp.maximum(h, 0.0).astype(w2_ref.dtype)          # ReLU (f32), re-pack for MXU
    h = jnp.dot(h, w2_ref[...], preferred_element_type=jnp.float32) + b2_ref[...]
    h = jnp.maximum(h, 0.0).astype(w3_ref.dtype)
    # Lane-dense final layer: contract W3's rows (dim 0) with h's feature dim
    # (dim 1) so the MXU result is already (2, TILE_B) -> unmasked full-lane
    # stores (m1 in row 0, m2 in row 1).
    out = lax.dot_general(
        w3_ref[...], h,
        dimension_numbers=(((0,), (1,)), ((), ())),
        preferred_element_type=jnp.float32)
    o_ref[...] = out + b3_ref[...]                        # b3: (2, 1), lane-broadcast


def _fuse_params(params, dot_dtype):
    """Pack the two branches into block-diagonal fused weights, (in, out) layout."""
    w1a, b1a, w2a, b2a, w3a, b3a = params["m1"]
    w1b, b1b, w2b, b2b, w3b, b3b = params["m2"]
    H = w1a.shape[1]
    zH = jnp.zeros((H, H), jnp.float32)
    z1 = jnp.zeros((H, 1), jnp.float32)

    W1 = jnp.concatenate([w1a, w1b], axis=1)                 # (in, 2H)
    W2 = jnp.block([[w2a, zH], [zH, w2b]])                   # (2H, 2H)
    W3 = jnp.block([[w3a, z1], [z1, w3b]])                   # (2H, 2)
    B1 = jnp.concatenate([b1a, b1b], axis=1)                 # (1, 2H)
    B2 = jnp.concatenate([b2a, b2b], axis=1)                 # (1, 2H)
    B3 = jnp.concatenate([b3a, b3b], axis=1).reshape(2, 1)   # (2, 1) for (2, B) output

    # Cast matmul operands once on the XLA side; biases stay f32 (accumulator dtype).
    return (W1.astype(dot_dtype), B1, W2.astype(dot_dtype), B2,
            W3.astype(dot_dtype), B3)


@functools.partial(jax.jit, static_argnames=("tile_b", "use_bf16"))
def mi_estimator_forward(z, params, *, tile_b=4096, use_bf16=True):
    """params: dict with keys m1/m2, each a tuple (w1, b1, w2, b2, w3, b3).
    Weights are (in, out); biases are (1, out).  Returns (m1, m2), each (B, 1)."""
    B, in_dim = z.shape
    dot_dtype = jnp.bfloat16 if use_bf16 else jnp.float32
    W1, B1, W2, B2, W3, B3 = _fuse_params(params, dot_dtype)

    # Pad the batch only to the sublane multiple (bf16 packs 2 rows / sublane).
    sub = 16 if use_bf16 else 8
    padded_b = _round_up(B, sub)

    # Tile choice: multiple of 128 lanes (lane-dense (2, tile) output block),
    # >= 2 grid steps whenever the batch allows it (megacore on v7x), capped at
    # tile_b.  Small batches fall back to a single full-array block.
    if padded_b >= 256:
        tile = min(_round_up(tile_b, 128),
                   max(128, _round_up(pl.cdiv(padded_b, 2), 128)))
    else:
        tile = padded_b
    grid = (pl.cdiv(padded_b, tile),)

    z_p = z.astype(dot_dtype)
    if padded_b != B:
        z_p = jnp.pad(z_p, ((0, padded_b - B), (0, 0)))

    resident = lambda a: pl.BlockSpec(a.shape, lambda i: (0, 0))  # stays in VMEM

    out = pl.pallas_call(
        _mi_kernel,
        out_shape=jax.ShapeDtypeStruct((2, padded_b), jnp.float32),
        grid=grid,
        in_specs=[
            pl.BlockSpec((tile, in_dim), lambda i: (i, 0)),       # z: tiled over batch
            resident(W1), resident(B1),
            resident(W2), resident(B2),
            resident(W3), resident(B3),
        ],
        out_specs=pl.BlockSpec((2, tile), lambda i: (0, i)),      # lane-dense output
        compiler_params=pltpu.CompilerParams(
            dimension_semantics=("parallel",)),                   # batch sharded on v7x
    )(z_p, W1, B1, W2, B2, W3, B3)

    out = out[:, :B]                      # drop sublane-pad columns
    return out[0, :, None], out[1, :, None]


def make_params(key, feature_dim, hidden_dim, labels_dim=1):
    """Deterministic synthetic init (stands in for utils.weight_init)."""
    in_dim = feature_dim + labels_dim

    def linear(k, fan_in, fan_out):
        kw, kb = jax.random.split(k)
        scale = 1.0 / jnp.sqrt(jnp.float32(fan_in))
        w = jax.random.uniform(kw, (fan_in, fan_out), jnp.float32, -scale, scale)
        b = jax.random.uniform(kb, (1, fan_out), jnp.float32, -scale, scale)
        return w, b

    keys = jax.random.split(key, 6)
    m1 = linear(keys[0], in_dim, hidden_dim) + \
         linear(keys[1], hidden_dim, hidden_dim) + \
         linear(keys[2], hidden_dim, 1)
    m2 = linear(keys[3], in_dim, hidden_dim) + \
         linear(keys[4], hidden_dim, hidden_dim) + \
         linear(keys[5], hidden_dim, 1)
    return {"m1": m1, "m2": m2}


def _reference(z, params):
    def mlp(p):
        w1, b1, w2, b2, w3, b3 = p
        h = jnp.maximum(z @ w1 + b1, 0.0)
        h = jnp.maximum(h @ w2 + b2, 0.0)
        return h @ w3 + b3
    return mlp(params["m1"]), mlp(params["m2"])


if __name__ == "__main__":
    feature_dim, labels_dim, hidden_dim = 31, 1, 32

    key = jax.random.PRNGKey(0)
    kz, kp = jax.random.split(key)
    params = make_params(kp, feature_dim, hidden_dim, labels_dim)

    # Case 1: f32 operand path, small batch, single grid step -> exact check.
    batch = 8
    z = jax.random.normal(kz, (batch, feature_dim + labels_dim), jnp.float32)
    m1, m2 = mi_estimator_forward(z, params, use_bf16=False)
    jax.block_until_ready((m1, m2))
    r1, r2 = _reference(z, params)
    assert m1.shape == (batch, 1) and m2.shape == (batch, 1)
    assert jnp.allclose(m1, r1, atol=1e-5), "M1 mismatch vs reference (f32 path)"
    assert jnp.allclose(m2, r2, atol=1e-5), "M2 mismatch vs reference (f32 path)"

    # Case 2: default bf16 path, multi-step grid + ragged batch (partial block,
    # >=2 steps so the parallel axis is exercised).
    batch2 = 300
    z2 = jax.random.normal(jax.random.PRNGKey(1),
                           (batch2, feature_dim + labels_dim), jnp.float32)
    m1b, m2b = mi_estimator_forward(z2, params)          # use_bf16=True default
    jax.block_until_ready((m1b, m2b))
    r1b, r2b = _reference(z2, params)
    assert m1b.shape == (batch2, 1) and m2b.shape == (batch2, 1)
    assert jnp.allclose(m1b, r1b, atol=5e-2, rtol=5e-2), "M1 mismatch (bf16 path)"
    assert jnp.allclose(m2b, r2b, atol=5e-2, rtol=5e-2), "M2 mismatch (bf16 path)"

    # Case 3: tiny ragged batch on the default path (single-step fallback).
    batch3 = 5
    z3 = jax.random.normal(jax.random.PRNGKey(2),
                           (batch3, feature_dim + labels_dim), jnp.float32)
    m1c, m2c = mi_estimator_forward(z3, params)
    jax.block_until_ready((m1c, m2c))
    r1c, r2c = _reference(z3, params)
    assert m1c.shape == (batch3, 1) and m2c.shape == (batch3, 1)
    assert jnp.allclose(m1c, r1c, atol=5e-2, rtol=5e-2), "M1 mismatch (ragged bf16)"
    assert jnp.allclose(m2c, r2c, atol=5e-2, rtol=5e-2), "M2 mismatch (ragged bf16)"

    print("KERNEL_OK")
</pallas_src>

<mosaic_0001>
module attributes {stable_mosaic.version = 11 : i64} {
  func.func @_mi_kernel(%arg0: i32, %arg1: memref<8x32xf32, #tpu.memory_space<vmem>>, %arg2: memref<32x64xf32, #tpu.memory_space<vmem>>, %arg3: memref<1x64xf32, #tpu.memory_space<vmem>>, %arg4: memref<64x64xf32, #tpu.memory_space<vmem>>, %arg5: memref<1x64xf32, #tpu.memory_space<vmem>>, %arg6: memref<64x2xf32, #tpu.memory_space<vmem>>, %arg7: memref<2x1xf32, #tpu.memory_space<vmem>>, %arg8: memref<2x8xf32, #tpu.memory_space<vmem>>) attributes {dimension_semantics = [#tpu.dimension_semantics<parallel>], iteration_bounds = array<i64: 1>, scalar_prefetch = 0 : i64, scratch_operands = 0 : i64, tpu.core_type = #tpu.core_type<tc>, window_params = [{transform_indices = @transform_0, window_bounds = array<i64: 8, 32>}, {pipeline_mode = #tpu.pipeline_mode<synchronous>, transform_indices = @transform_1, window_bounds = array<i64: 32, 64>}, {pipeline_mode = #tpu.pipeline_mode<synchronous>, transform_indices = @transform_2, window_bounds = array<i64: 1, 64>}, {pipeline_mode = #tpu.pipeline_mode<synchronous>, transform_indices = @transform_3, window_bounds = array<i64: 64, 64>}, {pipeline_mode = #tpu.pipeline_mode<synchronous>, transform_indices = @transform_4, window_bounds = array<i64: 1, 64>}, {pipeline_mode = #tpu.pipeline_mode<synchronous>, transform_indices = @transform_5, window_bounds = array<i64: 64, 2>}, {pipeline_mode = #tpu.pipeline_mode<synchronous>, transform_indices = @transform_6, window_bounds = array<i64: 2, 1>}, {transform_indices = @transform_7, window_bounds = array<i64: 2, 8>}]} {
    %c0 = arith.constant 0 : index
    %c0_0 = arith.constant 0 : index
    %0 = vector.load %arg1[%c0, %c0_0] : memref<8x32xf32, #tpu.memory_space<vmem>>, vector<8x32xf32>
    %c0_1 = arith.constant 0 : index
    %c0_2 = arith.constant 0 : index
    %1 = vector.load %arg2[%c0_1, %c0_2] : memref<32x64xf32, #tpu.memory_space<vmem>>, vector<32x64xf32>
    %cst = arith.constant dense<0.000000e+00> : vector<8x64xf32>
    %2 = tpu.matmul %0, %1, %cst {dimension_numbers = #tpu.dot_dimension_numbers<[1], [0], [0], [1], [0, 0, 1, 1], [], []>} : vector<8x32xf32>, vector<32x64xf32>, vector<8x64xf32> -> vector<8x64xf32>
    %c0_3 = arith.constant 0 : index
    %c0_4 = arith.constant 0 : index
    %3 = vector.load %arg3[%c0_3, %c0_4] : memref<1x64xf32, #tpu.memory_space<vmem>>, vector<1x64xf32>
    %4 = vector.broadcast %3 : vector<1x64xf32> to vector<8x64xf32>
    %5 = arith.addf %2, %4 : vector<8x64xf32>
    %cst_5 = arith.constant 0.000000e+00 : f32
    %6 = vector.broadcast %cst_5 : f32 to vector<8x64xf32>
    %7 = arith.maximumf %5, %6 : vector<8x64xf32>
    %c0_6 = arith.constant 0 : index
    %c0_7 = arith.constant 0 : index
    %8 = vector.load %arg4[%c0_6, %c0_7] : memref<64x64xf32, #tpu.memory_space<vmem>>, vector<64x64xf32>
    %cst_8 = arith.constant dense<0.000000e+00> : vector<8x64xf32>
    %9 = tpu.matmul %7, %8, %cst_8 {dimension_numbers = #tpu.dot_dimension_numbers<[1], [0], [0], [1], [0, 0, 1, 1], [], []>} : vector<8x64xf32>, vector<64x64xf32>, vector<8x64xf32> -> vector<8x64xf32>
    %c0_9 = arith.constant 0 : index
    %c0_10 = arith.constant 0 : index
    %10 = vector.load %arg5[%c0_9, %c0_10] : memref<1x64xf32, #tpu.memory_space<vmem>>, vector<1x64xf32>
    %11 = vector.broadcast %10 : vector<1x64xf32> to vector<8x64xf32>
    %12 = arith.addf %9, %11 : vector<8x64xf32>
    %cst_11 = arith.constant 0.000000e+00 : f32
    %13 = vector.broadcast %cst_11 : f32 to vector<8x64xf32>
    %14 = arith.maximumf %12, %13 : vector<8x64xf32>
    %c0_12 = arith.constant 0 : index
    %c0_13 = arith.constant 0 : index
    %15 = vector.load %arg6[%c0_12, %c0_13] : memref<64x2xf32, #tpu.memory_space<vmem>>, vector<64x2xf32>
    %cst_14 = arith.constant dense<0.000000e+00> : vector<2x8xf32>
    %16 = tpu.matmul %15, %14, %cst_14 {dimension_numbers = #tpu.dot_dimension_numbers<[0], [1], [1], [0], [0, 1, 1, 0], [], []>} : vector<64x2xf32>, vector<8x64xf32>, vector<2x8xf32> -> vector<2x8xf32>
    %c0_15 = arith.constant 0 : index
    %c0_16 = arith.constant 0 : index
    %17 = vector.load %arg7[%c0_15, %c0_16] : memref<2x1xf32, #tpu.memory_space<vmem>>, vector<2x1xf32>
    %18 = vector.broadcast %17 : vector<2x1xf32> to vector<2x8xf32>
    %19 = arith.addf %16, %18 : vector<2x8xf32>
    %c0_17 = arith.constant 0 : index
    %c0_18 = arith.constant 0 : index
    %20 = vector.load %arg8[%c0_17, %c0_18] : memref<2x8xf32, #tpu.memory_space<vmem>>, vector<2x8xf32>
    tpu.vector_store %arg8[%c0_17, %c0_18], %19 {strides = array<i32>} : memref<2x8xf32, #tpu.memory_space<vmem>>, vector<2x8xf32>,
    return
  }
  func.func @transform_0(%arg0: i32) -> (i32, i32) {
    %c0_i32 = arith.constant 0 : i32
    %c0_i32_0 = arith.constant 0 : i32
    return %arg0, %c0_i32 : i32, i32
  }
  func.func @transform_1(%arg0: i32) -> (i32, i32) {
    %c0_i32 = arith.constant 0 : i32
    %c0_i32_0 = arith.constant 0 : i32
    %c0_i32_1 = arith.constant 0 : i32
    return %c0_i32, %c0_i32_0 : i32, i32
  }
  func.func @transform_2(%arg0: i32) -> (i32, i32) {
    %c0_i32 = arith.constant 0 : i32
    %c0_i32_0 = arith.constant 0 : i32
    %c0_i32_1 = arith.constant 0 : i32
    return %c0_i32, %c0_i32_0 : i32, i32
  }
  func.func @transform_3(%arg0: i32) -> (i32, i32) {
    %c0_i32 = arith.constant 0 : i32
    %c0_i32_0 = arith.constant 0 : i32
    %c0_i32_1 = arith.constant 0 : i32
    return %c0_i32, %c0_i32_0 : i32, i32
  }
  func.func @transform_4(%arg0: i32) -> (i32, i32) {
    %c0_i32 = arith.constant 0 : i32
    %c0_i32_0 = arith.constant 0 : i32
    %c0_i32_1 = arith.constant 0 : i32
    return %c0_i32, %c0_i32_0 : i32, i32
  }
  func.func @transform_5(%arg0: i32) -> (i32, i32) {
    %c0_i32 = arith.constant 0 : i32
    %c0_i32_0 = arith.constant 0 : i32
    %c0_i32_1 = arith.constant 0 : i32
    return %c0_i32, %c0_i32_0 : i32, i32
  }
  func.func @transform_6(%arg0: i32) -> (i32, i32) {
    %c0_i32 = arith.constant 0 : i32
    %c0_i32_0 = arith.constant 0 : i32
    %c0_i32_1 = arith.constant 0 : i32
    return %c0_i32, %c0_i32_0 : i32, i32
  }
  func.func @transform_7(%arg0: i32) -> (i32, i32) {
    %c0_i32 = arith.constant 0 : i32
    %c0_i32_0 = arith.constant 0 : i32
    return %c0_i32, %arg0 : i32, i32
  }
}

</mosaic_0001>

<llo_original>
// kernel: mi_estimator_forward.1
$region0: #{mi_estimator_forward.1}
  #allocation0 [shape = 'u32[]', space=smem, size = 0x4, offset = 0x4, fixed_abs, tag = 'smem constant byte address 0x4 - core index']
  #allocation1 [shape = 'u32[144,128]{1,0:T(1,128)}', space=vmem, size = 0x12000, scoped, tag = 'internal scratch']
  %s0 = inlined_call_operand.vmem [shape: f32[8,32], index: 0, kind: input, shape index: {}]
  %s1 = inlined_call_operand.vmem [shape: f32[32,64], index: 1, kind: input, shape index: {}]
  %s2 = inlined_call_operand.vmem [shape: f32[1,64], index: 2, kind: input, shape index: {}]
  %s3 = inlined_call_operand.vmem [shape: f32[64,64], index: 3, kind: input, shape index: {}]
  %s4 = inlined_call_operand.vmem [shape: f32[1,64], index: 4, kind: input, shape index: {}]
  %s5 = inlined_call_operand.vmem [shape: f32[64,2], index: 5, kind: input, shape index: {}]
  %s6 = inlined_call_operand.vmem [shape: f32[2,1], index: 6, kind: input, shape index: {}]
  %s7 = inlined_call_operand.vmem [shape: f32[2,8], index: 7, kind: output, shape index: {}]
  %s8 = sld [smem:[#allocation0]]
  $region38: #{mi_estimator_forward.1} parent=0
    _
  %s10 = ssub.s32 1, %s8
  %s11 = scalar_select 0, %s10, %s8
  // Predicated region
  $region2: #{mi_estimator_forward.1} parent=0 // pred_check
    _
  $region3: #{mi_estimator_forward.1} parent=0 // pred_check_branch
    %13 = sbr.rel (0) target = $region5
  $region4: #{mi_estimator_forward.1} parent=0 // pred_region
    _
  $region5: #{mi_estimator_forward.1} parent=0 // pred_fallthru
    _
  // Predicated region
  $region6: #{mi_estimator_forward.1} parent=0 // pred_check
    _
  $region7: #{mi_estimator_forward.1} parent=0 // pred_check_branch
    %15 = sbr.rel (0) target = $region9
  $region8: #{mi_estimator_forward.1} parent=0 // pred_region
    _
  $region9: #{mi_estimator_forward.1} parent=0 // pred_fallthru
    _
  // Predicated region
  $region10: #{mi_estimator_forward.1} parent=0 // pred_check
    _
  $region11: #{mi_estimator_forward.1} parent=0 // pred_check_branch
    %17 = sbr.rel (0) target = $region13
  $region12: #{mi_estimator_forward.1} parent=0 // pred_region
    _
  $region13: #{mi_estimator_forward.1} parent=0 // pred_fallthru
    _
  // Predicated region
  $region14: #{mi_estimator_forward.1} parent=0 // pred_check
    _
  $region15: #{mi_estimator_forward.1} parent=0 // pred_check_branch
    %19 = sbr.rel (0) target = $region17
  $region16: #{mi_estimator_forward.1} parent=0 // pred_region
    _
  $region17: #{mi_estimator_forward.1} parent=0 // pred_fallthru
    _
  // Predicated region
  $region18: #{mi_estimator_forward.1} parent=0 // pred_check
    _
  $region19: #{mi_estimator_forward.1} parent=0 // pred_check_branch
    %21 = sbr.rel (0) target = $region21
  $region20: #{mi_estimator_forward.1} parent=0 // pred_region
    _
  $region21: #{mi_estimator_forward.1} parent=0 // pred_fallthru
    _
  // Predicated region
  $region22: #{mi_estimator_forward.1} parent=0 // pred_check
    _
  $region23: #{mi_estimator_forward.1} parent=0 // pred_check_branch
    %23 = sbr.rel (0) target = $region25
  $region24: #{mi_estimator_forward.1} parent=0 // pred_region
    _
  $region25: #{mi_estimator_forward.1} parent=0 // pred_fallthru
    _
  // Predicated region
  $region26: #{mi_estimator_forward.1} parent=0 // pred_check
    _
  $region27: #{mi_estimator_forward.1} parent=0 // pred_check_branch
    %25 = sbr.rel (0) target = $region29
  $region28: #{mi_estimator_forward.1} parent=0 // pred_region
    _
  $region29: #{mi_estimator_forward.1} parent=0 // pred_fallthru
    _
  %v26 = vld [vmem:[%s0] sm:$0xff]
  %v27 = vld [vmem:[%s1] sm:$0xff]
  %v28 = vld [vmem:[%s1 + $0x8] sm:$0xff]
  %v29 = vld [vmem:[%s1 + $0x10] sm:$0xff]
  %v30 = vld [vmem:[%s1 + $0x18] sm:$0xff]
  %v31 = vld [vmem:[%s2] sm:$0x1]
  %v33 = vlaneseq
  %v34 = vshrl.u32 %v33, 7
  %v35 = vsub.s32 0, %v34
  %v36 = vrot.slane %v31, %v35
  %vm38 = vcmask 261120
  %v40 = vsel %vm38, %v26, 0
  %42 = vmatprep.subr.mxu0 0.0
  %43 = vmatpush1.msra.mxu0 0.0
  %44 = vmatprep.subr.mxu0 0.0
  %45 = vmatpush1.msra.mxu0 0.0
  %46 = vmatprep.subr.mxu0 0.0
  %47 = vmatpush1.msra.mxu0 0.0
  %48 = vmatprep.subr.mxu0 0.0
  %49 = vmatpush1.msra.mxu0 0.0
  %50 = vmatprep.subr.mxu0 0.0
  %51 = vmatpush1.msra.mxu0 0.0
  %52 = vmatprep.subr.mxu0 0.0
  %53 = vmatpush1.msra.mxu0 0.0
  %54 = vmatprep.subr.mxu0 0.0
  %55 = vmatpush1.msra.mxu0 0.0
  %56 = vmatprep.subr.mxu0 0.0
  %57 = vmatpush1.msra.mxu0 0.0
  %58 = vmatprep.subr.mxu0 0.0
  %59 = vmatpush1.msra.mxu0 0.0
  %60 = vmatprep.subr.mxu0 0.0
  %61 = vmatpush1.msra.mxu0 0.0
  %62 = vmatprep.subr.mxu0 0.0
  %63 = vmatpush1.msra.mxu0 0.0
  %64 = vmatprep.subr.mxu0 0.0
  %65 = vmatpush1.msra.mxu0 0.0
  %66 = vmatprep.subr.mxu0 0.0
  %67 = vmatpush1.msra.mxu0 %v30
  %68 = vmatprep.subr.mxu0 0.0
  %69 = vmatpush1.msra.mxu0 %v29
  %70 = vmatprep.subr.mxu0 0.0
  %71 = vmatpush1.msra.mxu0 %v28
  %72 = vmatprep.subr.mxu0 0.0
  %73 = vmatpush1.msra.mxu0 %v27
  %74 = vmatprep.subr.mxu0 0.0
  %75 = vmatpush2.msra.mxu0 0.0
  %76 = vmatprep.subr.mxu0 0.0
  %77 = vmatpush2.msra.mxu0 0.0
  %78 = vmatprep.subr.mxu0 0.0
  %79 = vmatpush2.msra.mxu0 0.0
  %80 = vmatprep.subr.mxu0 0.0
  %81 = vmatpush2.msra.mxu0 0.0
  %82 = vmatprep.subr.mxu0 0.0
  %83 = vmatpush2.msra.mxu0 0.0
  %84 = vmatprep.subr.mxu0 0.0
  %85 = vmatpush2.msra.mxu0 0.0
  %86 = vmatprep.subr.mxu0 0.0
  %87 = vmatpush2.msra.mxu0 0.0
  %88 = vmatprep.subr.mxu0 0.0
  %89 = vmatpush2.msra.mxu0 0.0
  %90 = vmatprep.subr.mxu0 0.0
  %91 = vmatpush2.msra.mxu0 0.0
  %92 = vmatprep.subr.mxu0 0.0
  %93 = vmatpush2.msra.mxu0 0.0
  %94 = vmatprep.subr.mxu0 0.0
  %95 = vmatpush2.msra.mxu0 0.0
  %96 = vmatprep.subr.mxu0 0.0
  %97 = vmatpush2.msra.mxu0 0.0
  %98 = vmatprep.subr.mxu0 0.0
  %99 = vmatpush2.msra.mxu0 0.0
  %100 = vmatprep.subr.mxu0 0.0
  %101 = vmatpush2.msra.mxu0 0.0
  %102 = vmatprep.subr.mxu0 0.0
  %103 = vmatpush2.msra.mxu0 0.0
  %104 = vmatprep.subr.mxu0 0.0
  %105 = vmatpush2.msra.mxu0 0.0
  %106 = vmatprep.mubr.f32.mxu0 0.0
  %107 = vmatmul.mubr.f32.gmra.mxu0 %v40
  %v108 = vpop.f32.mrf.mxu0
  %v109 = vadd.f32 %v36, %v108
  %v110 = vpop.f32.mrf.mxu0
  %111 = vdwg.mxu0
  %v112 = vmax.f32 %v109, 0.0
  %v113 = vld [vmem:[%s3] sm:$0xff]
  %v114 = vld [vmem:[%s3 + $0x8] sm:$0xff]
  %v115 = vld [vmem:[%s3 + $0x10] sm:$0xff]
  %v116 = vld [vmem:[%s3 + $0x18] sm:$0xff]
  %v117 = vld [vmem:[%s3 + $0x20] sm:$0xff]
  %v118 = vld [vmem:[%s3 + $0x28] sm:$0xff]
  %v119 = vld [vmem:[%s3 + $0x30] sm:$0xff]
  %v120 = vld [vmem:[%s3 + $0x38] sm:$0xff]
  %v121 = vld [vmem:[%s4] sm:$0x1]
  %v123 = vlaneseq
  %v124 = vshrl.u32 %v123, 7
  %v125 = vsub.s32 0, %v124
  %v126 = vrot.slane %v121, %v125
  %vm128 = vcmask 523264
  %v130 = vsel %vm128, %v112, 0
  %132 = vmatprep.subr.mxu0 0.0
  %133 = vmatpush1.msra.mxu0 0.0
  %134 = vmatprep.subr.mxu0 0.0
  %135 = vmatpush1.msra.mxu0 0.0
  %136 = vmatprep.subr.mxu0 0.0
  %137 = vmatpush1.msra.mxu0 0.0
  %138 = vmatprep.subr.mxu0 0.0
  %139 = vmatpush1.msra.mxu0 0.0
  %140 = vmatprep.subr.mxu0 0.0
  %141 = vmatpush1.msra.mxu0 0.0
  %142 = vmatprep.subr.mxu0 0.0
  %143 = vmatpush1.msra.mxu0 0.0
  %144 = vmatprep.subr.mxu0 0.0
  %145 = vmatpush1.msra.mxu0 0.0
  %146 = vmatprep.subr.mxu0 0.0
  %147 = vmatpush1.msra.mxu0 0.0
  %148 = vmatprep.subr.mxu0 0.0
  %149 = vmatpush1.msra.mxu0 %v120
  %150 = vmatprep.subr.mxu0 0.0
  %151 = vmatpush1.msra.mxu0 %v119
  %152 = vmatprep.subr.mxu0 0.0
  %153 = vmatpush1.msra.mxu0 %v118
  %154 = vmatprep.subr.mxu0 0.0
  %155 = vmatpush1.msra.mxu0 %v117
  %156 = vmatprep.subr.mxu0 0.0
  %157 = vmatpush1.msra.mxu0 %v116
  %158 = vmatprep.subr.mxu0 0.0
  %159 = vmatpush1.msra.mxu0 %v115
  %160 = vmatprep.subr.mxu0 0.0
  %161 = vmatpush1.msra.mxu0 %v114
  %162 = vmatprep.subr.mxu0 0.0
  %163 = vmatpush1.msra.mxu0 %v113
  %164 = vmatprep.subr.mxu0 0.0
  %165 = vmatpush2.msra.mxu0 0.0
  %166 = vmatprep.subr.mxu0 0.0
  %167 = vmatpush2.msra.mxu0 0.0
  %168 = vmatprep.subr.mxu0 0.0
  %169 = vmatpush2.msra.mxu0 0.0
  %170 = vmatprep.subr.mxu0 0.0
  %171 = vmatpush2.msra.mxu0 0.0
  %172 = vmatprep.subr.mxu0 0.0
  %173 = vmatpush2.msra.mxu0 0.0
  %174 = vmatprep.subr.mxu0 0.0
  %175 = vmatpush2.msra.mxu0 0.0
  %176 = vmatprep.subr.mxu0 0.0
  %177 = vmatpush2.msra.mxu0 0.0
  %178 = vmatprep.subr.mxu0 0.0
  %179 = vmatpush2.msra.mxu0 0.0
  %180 = vmatprep.subr.mxu0 0.0
  %181 = vmatpush2.msra.mxu0 0.0
  %182 = vmatprep.subr.mxu0 0.0
  %183 = vmatpush2.msra.mxu0 0.0
  %184 = vmatprep.subr.mxu0 0.0
  %185 = vmatpush2.msra.mxu0 0.0
  %186 = vmatprep.subr.mxu0 0.0
  %187 = vmatpush2.msra.mxu0 0.0
  %188 = vmatprep.subr.mxu0 0.0
  %189 = vmatpush2.msra.mxu0 0.0
  %190 = vmatprep.subr.mxu0 0.0
  %191 = vmatpush2.msra.mxu0 0.0
  %192 = vmatprep.subr.mxu0 0.0
  %193 = vmatpush2.msra.mxu0 0.0
  %194 = vmatprep.subr.mxu0 0.0
  %195 = vmatpush2.msra.mxu0 0.0
  %196 = vmatprep.mubr.f32.mxu0 0.0
  %197 = vmatmul.mubr.f32.gmra.mxu0 %v130
  %v198 = vpop.f32.mrf.mxu0
  %v199 = vadd.f32 %v126, %v198
  %v200 = vpop.f32.mrf.mxu0
  %201 = vdwg.mxu0
  %v202 = vmax.f32 %v199, 0.0
  %v203 = vld [vmem:[%s5] sm:$0xff]
  %v204 = vld [vmem:[%s5 + $0x8] sm:$0xff]
  %v205 = vld [vmem:[%s5 + $0x10] sm:$0xff]
  %v206 = vld [vmem:[%s5 + $0x18] sm:$0xff]
  %v207 = vld [vmem:[%s5 + $0x20] sm:$0xff]
  %v208 = vld [vmem:[%s5 + $0x28] sm:$0xff]
  %v209 = vld [vmem:[%s5 + $0x30] sm:$0xff]
  %v210 = vld [vmem:[%s5 + $0x38] sm:$0xff]
  %v211 = vld [vmem:[%s6] sm:$0x3]
  %213 = vset.pattern.permute.xlu0 0
  %214 = vperm.xlu0 %213, %v211
  %v215 = vpop.permute.xlu0 %214
  %217 = vxpose.xlu0.b32.start [1/16] %v203, 128
  %218 = vxpose.xlu0.b32.cont [2/16] %v204, 128
  %219 = vxpose.xlu0.b32.cont [3/16] %v205, 128
  %220 = vxpose.xlu0.b32.cont [4/16] %v206, 128
  %221 = vxpose.xlu0.b32.cont [5/16] %v207, 128
  %222 = vxpose.xlu0.b32.cont [6/16] %v208, 128
  %223 = vxpose.xlu0.b32.cont [7/16] %v209, 128
  %224 = vxpose.xlu0.b32.cont [8/16] %v210, 128
  %225 = vxpose.xlu0.b32.cont [9/16] 0.0, 128
  %226 = vxpose.xlu0.b32.cont [10/16] 0.0, 128
  %227 = vxpose.xlu0.b32.cont [11/16] 0.0, 128
  %228 = vxpose.xlu0.b32.cont [12/16] 0.0, 128
  %229 = vxpose.xlu0.b32.cont [13/16] 0.0, 128
  %230 = vxpose.xlu0.b32.cont [14/16] 0.0, 128
  %231 = vxpose.xlu0.b32.cont [15/16] 0.0, 128
  %232 = vxpose.xlu0.b32.end [16/16] 0.0, 128
  %v233 = vpop.trf.xlu0
  %v234 = vpop.trf.xlu0
  %v235 = vpop.trf.xlu0
  %v236 = vpop.trf.xlu0
  %v237 = vpop.trf.xlu0
  %v238 = vpop.trf.xlu0
  %v239 = vpop.trf.xlu0
  %v240 = vpop.trf.xlu0
  %v241 = vpop.trf.xlu0
  %v242 = vpop.trf.xlu0
  %v243 = vpop.trf.xlu0
  %v244 = vpop.trf.xlu0
  %v245 = vpop.trf.xlu0
  %v246 = vpop.trf.xlu0
  %v247 = vpop.trf.xlu0
  %v248 = vpop.trf.xlu0
  %v250 = vsel %vm128, %v233, 0
  %v253 = vsel %vm128, %v202, 0
  %255 = vmatprep.subr.mxu0 0.0
  %256 = vmatpush1.xpose.msra.mxu0 0.0
  %257 = vmatprep.subr.mxu0 0.0
  %258 = vmatpush1.xpose.msra.mxu0 0.0
  %259 = vmatprep.subr.mxu0 0.0
  %260 = vmatpush1.xpose.msra.mxu0 0.0
  %261 = vmatprep.subr.mxu0 0.0
  %262 = vmatpush1.xpose.msra.mxu0 0.0
  %263 = vmatprep.subr.mxu0 0.0
  %264 = vmatpush1.xpose.msra.mxu0 0.0
  %265 = vmatprep.subr.mxu0 0.0
  %266 = vmatpush1.xpose.msra.mxu0 0.0
  %267 = vmatprep.subr.mxu0 0.0
  %268 = vmatpush1.xpose.msra.mxu0 0.0
  %269 = vmatprep.subr.mxu0 0.0
  %270 = vmatpush1.xpose.msra.mxu0 0.0
  %271 = vmatprep.subr.mxu0 0.0
  %272 = vmatpush1.xpose.msra.mxu0 0.0
  %273 = vmatprep.subr.mxu0 0.0
  %274 = vmatpush1.xpose.msra.mxu0 0.0
  %275 = vmatprep.subr.mxu0 0.0
  %276 = vmatpush1.xpose.msra.mxu0 0.0
  %277 = vmatprep.subr.mxu0 0.0
  %278 = vmatpush1.xpose.msra.mxu0 0.0
  %279 = vmatprep.subr.mxu0 0.0
  %280 = vmatpush1.xpose.msra.mxu0 0.0
  %281 = vmatprep.subr.mxu0 0.0
  %282 = vmatpush1.xpose.msra.mxu0 0.0
  %283 = vmatprep.subr.mxu0 0.0
  %284 = vmatpush1.xpose.msra.mxu0 0.0
  %285 = vmatprep.subr.mxu0 0.0
  %286 = vmatpush1.xpose.msra.mxu0 %v253
  %287 = vmatprep.subr.mxu0 0.0
  %288 = vmatpush2.xpose.msra.mxu0 0.0
  %289 = vmatprep.subr.mxu0 0.0
  %290 = vmatpush2.xpose.msra.mxu0 0.0
  %291 = vmatprep.subr.mxu0 0.0
  %292 = vmatpush2.xpose.msra.mxu0 0.0
  %293 = vmatprep.subr.mxu0 0.0
  %294 = vmatpush2.xpose.msra.mxu0 0.0
  %295 = vmatprep.subr.mxu0 0.0
  %296 = vmatpush2.xpose.msra.mxu0 0.0
  %297 = vmatprep.subr.mxu0 0.0
  %298 = vmatpush2.xpose.msra.mxu0 0.0
  %299 = vmatprep.subr.mxu0 0.0
  %300 = vmatpush2.xpose.msra.mxu0 0.0
  %301 = vmatprep.subr.mxu0 0.0
  %302 = vmatpush2.xpose.msra.mxu0 0.0
  %303 = vmatprep.subr.mxu0 0.0
  %304 = vmatpush2.xpose.msra.mxu0 0.0
  %305 = vmatprep.subr.mxu0 0.0
  %306 = vmatpush2.xpose.msra.mxu0 0.0
  %307 = vmatprep.subr.mxu0 0.0
  %308 = vmatpush2.xpose.msra.mxu0 0.0
  %309 = vmatprep.subr.mxu0 0.0
  %310 = vmatpush2.xpose.msra.mxu0 0.0
  %311 = vmatprep.subr.mxu0 0.0
  %312 = vmatpush2.xpose.msra.mxu0 0.0
  %313 = vmatprep.subr.mxu0 0.0
  %314 = vmatpush2.xpose.msra.mxu0 0.0
  %315 = vmatprep.subr.mxu0 0.0
  %316 = vmatpush2.xpose.msra.mxu0 0.0
  %317 = vmatprep.subr.mxu0 0.0
  %318 = vmatpush2.xpose.msra.mxu0 0.0
  %319 = vmatprep.mubr.f32.mxu0 0.0
  %320 = vmatmul.mubr.f32.gmra.mxu0 %v250
  %v321 = vpop.f32.mrf.mxu0
  %v322 = vadd.f32 %v215, %v321
  %v323 = vpop.f32.mrf.mxu0
  %324 = vdwg.mxu0
  %vm325 = vcmask 58368
  %326 = vst.msk [vmem:[%s7] sm:$0x3] %vm325, %v322
  // Predicated region
  $region30: #{mi_estimator_forward.1} parent=0 // pred_check
    _
  $region31: #{mi_estimator_forward.1} parent=0 // pred_check_branch
    %328 = sbr.rel (0) target = $region33
  $region32: #{mi_estimator_forward.1} parent=0 // pred_region
    _
  $region33: #{mi_estimator_forward.1} parent=0 // pred_fallthru
    _
  // Predicated region
  $region34: #{mi_estimator_forward.1} parent=0 // pred_check
    _
  $region35: #{mi_estimator_forward.1} parent=0 // pred_check_branch
    %330 = sbr.rel (0) target = $region37
  $region36: #{mi_estimator_forward.1} parent=0 // pred_region
    _
  $region37: #{mi_estimator_forward.1} parent=0 // pred_fallthru
    _

</llo_original>
